<compile_context>
chip_gen: v7x
topology: tpu7x:2x2x1
jax: 0.10.0
libtpu: 0.0.40
codegen_flags: <defaults>
</compile_context>

<pallas_src>
import functools
import inspect

import jax
import jax.numpy as jnp
from jax.experimental import pallas as pl
from jax.experimental.pallas import tpu as pltpu


# ---------------------------------------------------------------------------
# helpers
# ---------------------------------------------------------------------------
def _round_up(x, m):
    return ((x + m - 1) // m) * m


def _cdiv(a, b):
    return -(-a // b)


@functools.lru_cache(maxsize=None)
def _hw_info():
    """(vmem_limit_bytes, multi_tensorcore) with conservative fallbacks."""
    try:
        vmem_cap = int(pltpu.get_tpu_info().vmem_capacity_bytes)
    except Exception:
        vmem_cap = None
    if not vmem_cap or vmem_cap <= 0:
        vmem_cap = 64 * 1024 * 1024                  # assume smallest (v7x)
    # ~80% of physical VMEM, clamped to a sane range.
    vmem_limit = max(32 * 1024 * 1024,
                     min(int(vmem_cap * 0.8), 112 * 1024 * 1024))

    multi_tc = False
    try:
        kind = jax.devices()[0].device_kind.lower()
        # 2 TensorCores / megacore parts benefit from >=2 parallel grid steps;
        # single-TC v5e / v6e should NOT have their row tile shrunk for that.
        multi_tc = any(tag in kind for tag in ("v7", "v4", "v5p"))
    except Exception:
        multi_tc = False
    return vmem_limit, multi_tc


def _supports_pipeline_mode():
    if not hasattr(pl, "Buffered"):
        return False
    try:
        return "pipeline_mode" in inspect.signature(pl.BlockSpec).parameters
    except (TypeError, ValueError):
        return True


_PIPELINE_FALLBACK_ERRORS = (TypeError, NotImplementedError) + (
    (pltpu.LoweringException,) if hasattr(pltpu, "LoweringException") else ())


# ---------------------------------------------------------------------------
# kernels
# ---------------------------------------------------------------------------
def _mlp_fused_kernel(x_ref, w1_ref, b1_ref, w2_ref, b2_ref, o_ref):
    # fc1 on the MXU: cast the activation tile in-kernel (hidden under the
    # matmul); bf16 x bf16 -> f32 accumulation.
    x = x_ref[...].astype(w1_ref.dtype)
    h = jnp.dot(x, w1_ref[...], preferred_element_type=jnp.float32)
    h = jnp.maximum(h + b1_ref[...], 0.0)              # bias + ReLU in f32
    # TODO(synk): training-mode dropout (pltpu.prng_seed / prng_random_bits
    # masking) not implemented; inference-mode dropout is an identity.
    out = jnp.dot(h.astype(w2_ref.dtype), w2_ref[...],
                  preferred_element_type=jnp.float32)
    o_ref[...] = (out + b2_ref[...]).astype(o_ref.dtype)


def _mlp_ktiled_kernel(x_ref, w1_ref, b1_ref, w2_ref, b2_ref, o_ref, acc_ref):
    # Streams W1 column tiles / W2 row tiles over a hidden-dim grid axis,
    # accumulating fc2 in an f32 scratch (weights never fully VMEM-resident).
    k = pl.program_id(1)

    @pl.when(k == 0)
    def _():
        acc_ref[...] = jnp.zeros_like(acc_ref)

    x = x_ref[...].astype(w1_ref.dtype)
    h = jnp.dot(x, w1_ref[...], preferred_element_type=jnp.float32)
    h = jnp.maximum(h + b1_ref[...], 0.0)
    acc_ref[...] += jnp.dot(h.astype(w2_ref.dtype), w2_ref[...],
                            preferred_element_type=jnp.float32)

    @pl.when(k == pl.num_programs(1) - 1)
    def _():
        o_ref[...] = (acc_ref[...] + b2_ref[...]).astype(o_ref.dtype)


# ---------------------------------------------------------------------------
# parameter preparation (call ONCE, reuse across forward calls)
# ---------------------------------------------------------------------------
def prepare_mlp_params(w1, b1, w2, b2, *, compute_dtype=jnp.bfloat16):
    """Pad + cast the MLP parameters once (do NOT redo this per forward).

    Weights are stored as [in_features, out_features] (i.e. already transposed
    vs. torch's nn.Linear.weight) so the kernel computes plain x @ W + b.
    """
    D = w1.shape[0]
    assert w1.shape == (D, D) and b1.shape == (D,)
    assert w2.shape[0] == D and b2.shape == (w2.shape[1],)
    O = w2.shape[1]
    Hp = _round_up(D, 128)        # lane-dense hidden width
    Op = _round_up(O, 128)        # lane-dense output width (unmasked stores)

    # Zero-padded hidden columns give ReLU(0)=0 and zero W2 rows, so padding
    # contributes nothing to the result.
    w1p = jnp.zeros((D, Hp), compute_dtype).at[:, :D].set(w1.astype(compute_dtype))
    b1p = jnp.zeros((1, Hp), jnp.float32).at[0, :D].set(b1.astype(jnp.float32))
    w2p = jnp.zeros((Hp, Op), compute_dtype).at[:D, :O].set(w2.astype(compute_dtype))
    b2p = jnp.zeros((1, Op), jnp.float32).at[0, :O].set(b2.astype(jnp.float32))
    return dict(w1=w1p, b1=b1p, w2=w2p, b2=b2p, D=D, O=O, Hp=Hp, Op=Op)


# ---------------------------------------------------------------------------
# forward
# ---------------------------------------------------------------------------
def mlp_pallas(x, params, *, tb=512, out_dtype=None,
               force_ktiled=False, ktile=None):
    """x: [N, D] -> [N, O] using parameters from prepare_mlp_params."""
    N, D = x.shape
    assert D == params["D"], "feature dim mismatch with prepared params"
    O, Hp, Op = params["O"], params["Hp"], params["Op"]
    w1p, b1p, w2p, b2p = params["w1"], params["b1"], params["w2"], params["b2"]
    out_dtype = x.dtype if out_dtype is None else out_dtype
    out_itemsize = jnp.dtype(out_dtype).itemsize

    vmem_limit, multi_tc = _hw_info()
    weight_bytes = (w1p.size * w1p.dtype.itemsize
                    + w2p.size * w2p.dtype.itemsize
                    + b1p.size * 4 + b2p.size * 4)

    # VMEM bytes per batch row: x/out double-buffered + f32/bf16 hidden
    # intermediates + bf16 x copy + f32 accumulator (K-tiled path).
    per_row = (2 * D * x.dtype.itemsize
               + 2 * Op * out_itemsize
               + 6 * Hp
               + 2 * D + 4 * Op)
    headroom = 2 * 1024 * 1024

    def pick_tb(resident_bytes):
        budget = vmem_limit - resident_bytes - headroom
        cap = max(8, (budget // max(per_row, 1)) // 8 * 8)
        t = max(8, (min(tb, cap, _round_up(N, 8)) // 8) * 8)
        if multi_tc and N > 8:
            # 2 TensorCores: aim for an even (>= 2) number of row tiles so
            # neither core idles on the last step.
            steps = _cdiv(N, t)
            if steps < 2:
                steps = 2
            elif steps % 2:
                steps += 1
            t = max(8, _round_up(_cdiv(N, steps), 8))
        return t

    def run_fused(single_buffer):
        tb_r = pick_tb((1 if single_buffer else 2) * weight_bytes)
        grid = (_cdiv(N, tb_r),)
        w_kw = {"pipeline_mode": pl.Buffered(1)} if single_buffer else {}
        return pl.pallas_call(
            _mlp_fused_kernel,
            out_shape=jax.ShapeDtypeStruct((N, Op), out_dtype),
            grid_spec=pltpu.PrefetchScalarGridSpec(
                num_scalar_prefetch=0,
                grid=grid,
                in_specs=[
                    pl.BlockSpec((tb_r, D), lambda i: (i, 0)),         # x rows
                    pl.BlockSpec((D, Hp), lambda i: (0, 0), **w_kw),   # W1
                    pl.BlockSpec((1, Hp), lambda i: (0, 0), **w_kw),   # b1
                    pl.BlockSpec((Hp, Op), lambda i: (0, 0), **w_kw),  # W2
                    pl.BlockSpec((1, Op), lambda i: (0, 0), **w_kw),   # b2
                ],
                out_specs=pl.BlockSpec((tb_r, Op), lambda i: (i, 0)),
            ),
            compiler_params=pltpu.CompilerParams(
                dimension_semantics=("parallel",),
                vmem_limit_bytes=vmem_limit,
            ),
        )(x, w1p, b1p, w2p, b2p)

    def run_ktiled():
        # hidden-dim chunk: multiple of 128 that divides Hp and keeps the
        # streamed (double-buffered) weight tiles comfortably inside VMEM
        if ktile is not None and ktile % 128 == 0 and Hp % ktile == 0:
            tk = ktile
        else:
            tk = 128
            for cand in (512, 256, 128):
                if Hp % cand == 0 and 4 * cand * (D + Op) <= vmem_limit // 3:
                    tk = cand
                    break
        stream_bytes = 4 * tk * (D + Op) + 4 * (Hp + Op)
        tb_r = pick_tb(stream_bytes)
        grid = (_cdiv(N, tb_r), Hp // tk)
        return pl.pallas_call(
            _mlp_ktiled_kernel,
            out_shape=jax.ShapeDtypeStruct((N, Op), out_dtype),
            grid_spec=pltpu.PrefetchScalarGridSpec(
                num_scalar_prefetch=0,
                grid=grid,
                in_specs=[
                    pl.BlockSpec((tb_r, D), lambda i, k: (i, 0)),  # x (resident over k)
                    pl.BlockSpec((D, tk), lambda i, k: (0, k)),    # W1 column tile
                    pl.BlockSpec((1, tk), lambda i, k: (0, k)),    # b1 chunk
                    pl.BlockSpec((tk, Op), lambda i, k: (k, 0)),   # W2 row tile
                    pl.BlockSpec((1, Op), lambda i, k: (0, 0)),    # b2
                ],
                out_specs=pl.BlockSpec((tb_r, Op), lambda i, k: (i, 0)),
                scratch_shapes=[pltpu.VMEM((tb_r, Op), jnp.float32)],
            ),
            compiler_params=pltpu.CompilerParams(
                dimension_semantics=("parallel", "arbitrary"),
                vmem_limit_bytes=vmem_limit,
            ),
        )(x, w1p, b1p, w2p, b2p)

    # ---- path selection ----------------------------------------------------
    single_buffer_needed = False
    use_ktiled = bool(force_ktiled)
    if not use_ktiled:
        # budget after keeping a decent (>=64-row) activation tile alive
        resident_budget = vmem_limit - headroom - per_row * 64
        if 2 * weight_bytes <= resident_budget:
            pass                                    # resident, default buffering
        elif weight_bytes <= resident_budget and _supports_pipeline_mode():
            single_buffer_needed = True             # resident only if single-buffered
        else:
            use_ktiled = True

    if use_ktiled:
        out = run_ktiled()
    elif not single_buffer_needed:
        out = run_fused(False)
    else:
        try:
            out = run_fused(True)
        except _PIPELINE_FALLBACK_ERRORS:
            # pl.Buffered(1) rejected on this build: stream the weights instead
            # (never fall back to the larger double-buffered footprint).
            out = run_ktiled()

    return out if Op == O else out[:, :O]


# ---------------------------------------------------------------------------
# references
# ---------------------------------------------------------------------------
def mlp_ref_f32(x, w1, b1, w2, b2):
    h = jnp.maximum(x @ w1 + b1, 0.0)
    return h @ w2 + b2


def mlp_ref_bf16(x, w1, b1, w2, b2):
    h = jnp.dot(x.astype(jnp.bfloat16), w1.astype(jnp.bfloat16),
                preferred_element_type=jnp.float32) + b1
    h = jnp.maximum(h, 0.0)
    out = jnp.dot(h.astype(jnp.bfloat16), w2.astype(jnp.bfloat16),
                  preferred_element_type=jnp.float32) + b2
    return out.astype(x.dtype)


if __name__ == "__main__":
    key = jax.random.PRNGKey(0)

    cases = [
        # (N, input_dim, output_dim, force_ktiled, ktile)
        (50, 32, 16, False, None),     # ragged batch + lane padding, fused path
        (256, 128, 64, False, None),   # aligned fused path
        (64, 256, 32, True, 128),      # forced hidden-dim (K) streaming path
    ]
    for (N, input_dim, output_dim, force_kt, kt) in cases:
        key, kx, k1, k2, k3, k4 = jax.random.split(key, 6)
        x = jax.random.normal(kx, (N, input_dim), dtype=jnp.float32)

        bound = 1.0 / (input_dim ** 0.5)
        w1 = jax.random.uniform(k1, (input_dim, input_dim), jnp.float32, -bound, bound)
        b1 = jax.random.uniform(k2, (input_dim,), jnp.float32, -bound, bound)
        w2 = jax.random.uniform(k3, (input_dim, output_dim), jnp.float32, -bound, bound)
        b2 = jax.random.uniform(k4, (output_dim,), jnp.float32, -bound, bound)

        # pad / cast once (reused across forward calls)
        params = prepare_mlp_params(w1, b1, w2, b2)

        out = jax.block_until_ready(
            mlp_pallas(x, params, force_ktiled=force_kt, ktile=kt))
        assert out.shape == (N, output_dim), out.shape

        ref_bf = mlp_ref_bf16(x, w1, b1, w2, b2)
        ref_32 = mlp_ref_f32(x, w1, b1, w2, b2)
        assert jnp.allclose(out, ref_bf, atol=2e-2, rtol=2e-2), "mismatch vs bf16 reference"
        assert jnp.allclose(out, ref_32, atol=8e-2, rtol=8e-2), "mismatch vs f32 reference"

    print("KERNEL_OK")
</pallas_src>

<mosaic_0001>
module attributes {stable_mosaic.version = 11 : i64} {
  func.func @_mlp_fused_kernel(%arg0: i32, %arg1: memref<56x32xf32, #tpu.memory_space<vmem>>, %arg2: memref<32x128xbf16, #tpu.memory_space<vmem>>, %arg3: memref<1x128xf32, #tpu.memory_space<vmem>>, %arg4: memref<128x128xbf16, #tpu.memory_space<vmem>>, %arg5: memref<1x128xf32, #tpu.memory_space<vmem>>, %arg6: memref<56x128xf32, #tpu.memory_space<vmem>>) attributes {dimension_semantics = [#tpu.dimension_semantics<parallel>], iteration_bounds = array<i64: 1>, scalar_prefetch = 0 : i64, scratch_operands = 0 : i64, tpu.core_type = #tpu.core_type<tc>, window_params = [{transform_indices = @transform_0, window_bounds = array<i64: 56, 32>}, {pipeline_mode = #tpu.pipeline_mode<synchronous>, transform_indices = @transform_1, window_bounds = array<i64: 32, 128>}, {pipeline_mode = #tpu.pipeline_mode<synchronous>, transform_indices = @transform_2, window_bounds = array<i64: 1, 128>}, {pipeline_mode = #tpu.pipeline_mode<synchronous>, transform_indices = @transform_3, window_bounds = array<i64: 128, 128>}, {pipeline_mode = #tpu.pipeline_mode<synchronous>, transform_indices = @transform_4, window_bounds = array<i64: 1, 128>}, {transform_indices = @transform_5, window_bounds = array<i64: 56, 128>}]} {
    %c0 = arith.constant 0 : index
    %c0_0 = arith.constant 0 : index
    %0 = vector.load %arg1[%c0, %c0_0] : memref<56x32xf32, #tpu.memory_space<vmem>>, vector<56x32xf32>
    %1 = arith.truncf %0 : vector<56x32xf32> to vector<56x32xbf16>
    %c0_1 = arith.constant 0 : index
    %c0_2 = arith.constant 0 : index
    %2 = vector.load %arg2[%c0_1, %c0_2] : memref<32x128xbf16, #tpu.memory_space<vmem>>, vector<32x128xbf16>
    %cst = arith.constant dense<0.000000e+00> : vector<56x128xf32>
    %3 = tpu.matmul %1, %2, %cst {dimension_numbers = #tpu.dot_dimension_numbers<[1], [0], [0], [1], [0, 0, 1, 1], [], []>} : vector<56x32xbf16>, vector<32x128xbf16>, vector<56x128xf32> -> vector<56x128xf32>
    %c0_3 = arith.constant 0 : index
    %c0_4 = arith.constant 0 : index
    %4 = vector.load %arg3[%c0_3, %c0_4] : memref<1x128xf32, #tpu.memory_space<vmem>>, vector<1x128xf32>
    %5 = vector.broadcast %4 : vector<1x128xf32> to vector<56x128xf32>
    %6 = arith.addf %3, %5 : vector<56x128xf32>
    %cst_5 = arith.constant 0.000000e+00 : f32
    %7 = vector.broadcast %cst_5 : f32 to vector<56x128xf32>
    %8 = arith.maximumf %6, %7 : vector<56x128xf32>
    %9 = arith.truncf %8 : vector<56x128xf32> to vector<56x128xbf16>
    %c0_6 = arith.constant 0 : index
    %c0_7 = arith.constant 0 : index
    %10 = vector.load %arg4[%c0_6, %c0_7] : memref<128x128xbf16, #tpu.memory_space<vmem>>, vector<128x128xbf16>
    %cst_8 = arith.constant dense<0.000000e+00> : vector<56x128xf32>
    %11 = tpu.matmul %9, %10, %cst_8 {dimension_numbers = #tpu.dot_dimension_numbers<[1], [0], [0], [1], [0, 0, 1, 1], [], []>} : vector<56x128xbf16>, vector<128x128xbf16>, vector<56x128xf32> -> vector<56x128xf32>
    %c0_9 = arith.constant 0 : index
    %c0_10 = arith.constant 0 : index
    %12 = vector.load %arg5[%c0_9, %c0_10] : memref<1x128xf32, #tpu.memory_space<vmem>>, vector<1x128xf32>
    %13 = vector.broadcast %12 : vector<1x128xf32> to vector<56x128xf32>
    %14 = arith.addf %11, %13 : vector<56x128xf32>
    %c0_11 = arith.constant 0 : index
    %c0_12 = arith.constant 0 : index
    %15 = vector.load %arg6[%c0_11, %c0_12] : memref<56x128xf32, #tpu.memory_space<vmem>>, vector<56x128xf32>
    tpu.vector_store %arg6[%c0_11, %c0_12], %14 {strides = array<i32>} : memref<56x128xf32, #tpu.memory_space<vmem>>, vector<56x128xf32>,
    return
  }
  func.func @transform_0(%arg0: i32) -> (i32, i32) {
    %c0_i32 = arith.constant 0 : i32
    %c0_i32_0 = arith.constant 0 : i32
    return %arg0, %c0_i32 : i32, i32
  }
  func.func @transform_1(%arg0: i32) -> (i32, i32) {
    %c0_i32 = arith.constant 0 : i32
    %c0_i32_0 = arith.constant 0 : i32
    %c0_i32_1 = arith.constant 0 : i32
    return %c0_i32, %c0_i32_0 : i32, i32
  }
  func.func @transform_2(%arg0: i32) -> (i32, i32) {
    %c0_i32 = arith.constant 0 : i32
    %c0_i32_0 = arith.constant 0 : i32
    %c0_i32_1 = arith.constant 0 : i32
    return %c0_i32, %c0_i32_0 : i32, i32
  }
  func.func @transform_3(%arg0: i32) -> (i32, i32) {
    %c0_i32 = arith.constant 0 : i32
    %c0_i32_0 = arith.constant 0 : i32
    %c0_i32_1 = arith.constant 0 : i32
    return %c0_i32, %c0_i32_0 : i32, i32
  }
  func.func @transform_4(%arg0: i32) -> (i32, i32) {
    %c0_i32 = arith.constant 0 : i32
    %c0_i32_0 = arith.constant 0 : i32
    %c0_i32_1 = arith.constant 0 : i32
    return %c0_i32, %c0_i32_0 : i32, i32
  }
  func.func @transform_5(%arg0: i32) -> (i32, i32) {
    %c0_i32 = arith.constant 0 : i32
    %c0_i32_0 = arith.constant 0 : i32
    return %arg0, %c0_i32 : i32, i32
  }
}

</mosaic_0001>

<llo_original>
// kernel: tpu_custom_call.1
$region0: #{tpu_custom_call.1}
  #allocation0 [shape = 'u32[]', space=smem, size = 0x4, offset = 0x4, fixed_abs, tag = 'smem constant byte address 0x4 - core index']
  #allocation1 [shape = 'u32[144,128]{1,0:T(1,128)}', space=vmem, size = 0x12000, scoped, tag = 'internal scratch']
  %s0 = inlined_call_operand.vmem [shape: f32[50,32], index: 0, kind: input, shape index: {}]
  %s1 = inlined_call_operand.vmem [shape: bf16[32,128], index: 1, kind: input, shape index: {}]
  %s2 = inlined_call_operand.vmem [shape: f32[1,128], index: 2, kind: input, shape index: {}]
  %s3 = inlined_call_operand.vmem [shape: bf16[128,128], index: 3, kind: input, shape index: {}]
  %s4 = inlined_call_operand.vmem [shape: f32[1,128], index: 4, kind: input, shape index: {}]
  %s5 = inlined_call_operand.hbm [shape: f32[50,128], index: 5, kind: output, shape index: {}]
  %s6 = sld [smem:[#allocation0]]
  $region30: #{tpu_custom_call.1} parent=0
    _
  %s8 = ssub.s32 1, %s6
  %s9 = scalar_select 0, %s8, %s6
  $region1: #{tpu_custom_call.1} parent=0
    #allocation2 [shape = 'u8[28672]{0}', space=vmem, size = 0x7000, scoped, tag = 'output window, operand 0, single buffered']
    #allocation3 [shape = 's32[1]{0}', space=sflag, size = 0x4, scoped, tag = 'scoped memory for tpu_custom_call.1']
    %10 = vsyncpa [#allocation3], 0
    // Predicated region
    $region2: #{tpu_custom_call.1} parent=1 // pred_check
      _
    $region3: #{tpu_custom_call.1} parent=1 // pred_check_branch
      %12 = sbr.rel (0) target = $region5
    $region4: #{tpu_custom_call.1} parent=1 // pred_region
      _
    $region5: #{tpu_custom_call.1} parent=1 // pred_fallthru
      _
    // Predicated region
    $region6: #{tpu_custom_call.1} parent=1 // pred_check
      _
    $region7: #{tpu_custom_call.1} parent=1 // pred_check_branch
      %14 = sbr.rel (0) target = $region9
    $region8: #{tpu_custom_call.1} parent=1 // pred_region
      _
    $region9: #{tpu_custom_call.1} parent=1 // pred_fallthru
      _
    // Predicated region
    $region10: #{tpu_custom_call.1} parent=1 // pred_check
      _
    $region11: #{tpu_custom_call.1} parent=1 // pred_check_branch
      %16 = sbr.rel (0) target = $region13
    $region12: #{tpu_custom_call.1} parent=1 // pred_region
      _
    $region13: #{tpu_custom_call.1} parent=1 // pred_fallthru
      _
    // Predicated region
    $region14: #{tpu_custom_call.1} parent=1 // pred_check
      _
    $region15: #{tpu_custom_call.1} parent=1 // pred_check_branch
      %18 = sbr.rel (0) target = $region17
    $region16: #{tpu_custom_call.1} parent=1 // pred_region
      _
    $region17: #{tpu_custom_call.1} parent=1 // pred_fallthru
      _
    // Predicated region
    $region18: #{tpu_custom_call.1} parent=1 // pred_check
      _
    $region19: #{tpu_custom_call.1} parent=1 // pred_check_branch
      %20 = sbr.rel (0) target = $region21
    $region20: #{tpu_custom_call.1} parent=1 // pred_region
      _
    $region21: #{tpu_custom_call.1} parent=1 // pred_fallthru
      _
    %v22 = vld [vmem:[%s0] sm:$0xff]
    %v23 = vld [vmem:[%s0 + $0x8] sm:$0xff]
    %v24 = vld [vmem:[%s0 + $0x10] sm:$0xff]
    %v25 = vld [vmem:[%s0 + $0x18] sm:$0xff]
    %v26 = vld [vmem:[%s0 + $0x20] sm:$0xff]
    %v27 = vld [vmem:[%s0 + $0x28] sm:$0xff]
    %v28 = vld [vmem:[%s0 + $0x30] sm:$0xff]
    %v29 = vpack.c.bf16 %v23, %v22
    %v30 = vpack.c.bf16 %v25, %v24
    %v31 = vpack.c.bf16 %v27, %v26
    %v32 = vpack.c.bf16 %v28, %v28
    %v33 = vld [vmem:[%s1] sm:$0xf]
    %v34 = vld [vmem:[%s1 + $0x4] sm:$0xf]
    %v35 = vld [vmem:[%s1 + $0x8] sm:$0xf]
    %v36 = vld [vmem:[%s1 + $0xc] sm:$0xf]
    %v37 = vld [vmem:[%s2] sm:$0x1]
    %v39 = vlaneseq
    %v40 = vshrl.u32 %v39, 7
    %v41 = vsub.s32 0, %v40
    %v42 = vrot.slane %v37, %v41
    %v48 = vunpack.c.l.b16 %v33
    %v49 = vunpack.c.l.b16 %v34
    %v50 = vunpack.c.l.b16 %v35
    %v51 = vunpack.c.l.b16 %v36
    %v52 = vpack.c.b16 %v49, %v48
    %v53 = vpack.c.b16 %v51, %v50
    %vm56 = vcmask 261120
    %v58 = vsel %vm56, %v29, 0
    %v61 = vsel %vm56, %v30, 0
    %v64 = vsel %vm56, %v31, 0
    %v67 = vsel %vm56, %v32, 0
    %69 = vmatprep.subr.bf16.mxu0 0
    %70 = vmatpush1.bf16.msra.mxu0 %v52
    %71 = vmatprep.subr.bf16.mxu0 0
    %72 = vmatpush1.bf16.msra.mxu0 %v53
    %73 = vmatprep.subr.bf16.mxu0 0
    %74 = vmatpush1.bf16.msra.mxu0 0
    %75 = vmatprep.subr.bf16.mxu0 0
    %76 = vmatpush1.bf16.msra.mxu0 0
    %77 = vmatprep.subr.bf16.mxu0 0
    %78 = vmatpush1.bf16.msra.mxu0 0
    %79 = vmatprep.subr.bf16.mxu0 0
    %80 = vmatpush1.bf16.msra.mxu0 0
    %81 = vmatprep.subr.bf16.mxu0 0
    %82 = vmatpush1.bf16.msra.mxu0 0
    %83 = vmatprep.subr.bf16.mxu0 0
    %84 = vmatpush1.bf16.msra.mxu0 0
    %85 = vmatprep.subr.bf16.mxu0 0
    %86 = vmatpush1.bf16.msra.mxu0 0
    %87 = vmatprep.subr.bf16.mxu0 0
    %88 = vmatpush1.bf16.msra.mxu0 0
    %89 = vmatprep.subr.bf16.mxu0 0
    %90 = vmatpush1.bf16.msra.mxu0 0
    %91 = vmatprep.subr.bf16.mxu0 0
    %92 = vmatpush1.bf16.msra.mxu0 0
    %93 = vmatprep.subr.bf16.mxu0 0
    %94 = vmatpush1.bf16.msra.mxu0 0
    %95 = vmatprep.subr.bf16.mxu0 0
    %96 = vmatpush1.bf16.msra.mxu0 0
    %97 = vmatprep.subr.bf16.mxu0 0
    %98 = vmatpush1.bf16.msra.mxu0 0
    %99 = vmatprep.subr.bf16.mxu0 0
    %100 = vmatpush1.bf16.msra.mxu0 0
    %101 = vmatprep.mubr.bf16.mxu0 0
    %102 = vmatmul.mubr.bf16.gmra.mrb[0].mxu0 %v58
    %v103 = vpop.f32.mrb[0].mxu0
    %v104 = vadd.f32 %v42, %v103
    %v105 = vpop.f32.mrb[0].mxu0
    %v106 = vpop.f32.mrb[0].mxu0
    %v107 = vadd.f32 %v42, %v106
    %v108 = vpop.f32.mrb[0].mxu0
    %109 = vmatprep.mubr.bf16.mxu0 0
    %110 = vmatmul.mubr.bf16.gmra.mrb[0].mxu0 %v61
    %v111 = vpop.f32.mrb[0].mxu0
    %v112 = vadd.f32 %v42, %v111
    %v113 = vpop.f32.mrb[0].mxu0
    %v114 = vpop.f32.mrb[0].mxu0
    %v115 = vadd.f32 %v42, %v114
    %v116 = vpop.f32.mrb[0].mxu0
    %117 = vmatprep.mubr.bf16.mxu0 0
    %118 = vmatmul.mubr.bf16.gmra.mrb[0].mxu0 %v64
    %v119 = vpop.f32.mrb[0].mxu0
    %v120 = vadd.f32 %v42, %v119
    %v121 = vpop.f32.mrb[0].mxu0
    %v122 = vpop.f32.mrb[0].mxu0
    %v123 = vadd.f32 %v42, %v122
    %v124 = vpop.f32.mrb[0].mxu0
    %125 = vmatprep.mubr.bf16.mxu0 0
    %126 = vmatmul.mubr.bf16.gmra.mrb[0].mxu0 %v67
    %v127 = vpop.f32.mrb[0].mxu0
    %v128 = vadd.f32 %v42, %v127
    %v129 = vpop.f32.mrb[0].mxu0
    %v130 = vpop.f32.mrb[0].mxu0
    %v131 = vpop.f32.mrb[0].mxu0
    %132 = vdwg.mxu0
    %v133 = vmax.f32 %v104, 0.0
    %v134 = vmax.f32 %v107, 0.0
    %v135 = vmax.f32 %v112, 0.0
    %v136 = vmax.f32 %v115, 0.0
    %v137 = vmax.f32 %v120, 0.0
    %v138 = vmax.f32 %v123, 0.0
    %v139 = vmax.f32 %v128, 0.0
    %v140 = vpack.c.bf16 %v134, %v133
    %v141 = vpack.c.bf16 %v136, %v135
    %v142 = vpack.c.bf16 %v138, %v137
    %v143 = vpack.c.bf16 %v139, %v139
    %v144 = vld [vmem:[%s3] sm:$0xf]
    %v145 = vld [vmem:[%s3 + $0x4] sm:$0xf]
    %v146 = vld [vmem:[%s3 + $0x8] sm:$0xf]
    %v147 = vld [vmem:[%s3 + $0xc] sm:$0xf]
    %v148 = vld [vmem:[%s3 + $0x10] sm:$0xf]
    %v149 = vld [vmem:[%s3 + $0x14] sm:$0xf]
    %v150 = vld [vmem:[%s3 + $0x18] sm:$0xf]
    %v151 = vld [vmem:[%s3 + $0x1c] sm:$0xf]
    %v152 = vld [vmem:[%s3 + $0x20] sm:$0xf]
    %v153 = vld [vmem:[%s3 + $0x24] sm:$0xf]
    %v154 = vld [vmem:[%s3 + $0x28] sm:$0xf]
    %v155 = vld [vmem:[%s3 + $0x2c] sm:$0xf]
    %v156 = vld [vmem:[%s3 + $0x30] sm:$0xf]
    %v157 = vld [vmem:[%s3 + $0x34] sm:$0xf]
    %v158 = vld [vmem:[%s3 + $0x38] sm:$0xf]
    %v159 = vld [vmem:[%s3 + $0x3c] sm:$0xf]
    %v160 = vld [vmem:[%s4] sm:$0x1]
    %v162 = vlaneseq
    %v163 = vshrl.u32 %v162, 7
    %v164 = vsub.s32 0, %v163
    %v165 = vrot.slane %v160, %v164
    %v183 = vunpack.c.l.b16 %v144
    %v184 = vunpack.c.l.b16 %v145
    %v185 = vunpack.c.l.b16 %v146
    %v186 = vunpack.c.l.b16 %v147
    %v187 = vunpack.c.l.b16 %v148
    %v188 = vunpack.c.l.b16 %v149
    %v189 = vunpack.c.l.b16 %v150
    %v190 = vunpack.c.l.b16 %v151
    %v191 = vunpack.c.l.b16 %v152
    %v192 = vunpack.c.l.b16 %v153
    %v193 = vunpack.c.l.b16 %v154
    %v194 = vunpack.c.l.b16 %v155
    %v195 = vunpack.c.l.b16 %v156
    %v196 = vunpack.c.l.b16 %v157
    %v197 = vunpack.c.l.b16 %v158
    %v198 = vunpack.c.l.b16 %v159
    %v199 = vpack.c.b16 %v184, %v183
    %v200 = vpack.c.b16 %v186, %v185
    %v201 = vpack.c.b16 %v188, %v187
    %v202 = vpack.c.b16 %v190, %v189
    %v203 = vpack.c.b16 %v192, %v191
    %v204 = vpack.c.b16 %v194, %v193
    %v205 = vpack.c.b16 %v196, %v195
    %v206 = vpack.c.b16 %v198, %v197
    %215 = vmatprep.subr.bf16.mxu0 0
    %216 = vmatpush1.bf16.msra.mxu0 %v199
    %217 = vmatprep.subr.bf16.mxu0 0
    %218 = vmatpush1.bf16.msra.mxu0 %v200
    %219 = vmatprep.subr.bf16.mxu0 0
    %220 = vmatpush1.bf16.msra.mxu0 %v201
    %221 = vmatprep.subr.bf16.mxu0 0
    %222 = vmatpush1.bf16.msra.mxu0 %v202
    %223 = vmatprep.subr.bf16.mxu0 0
    %224 = vmatpush1.bf16.msra.mxu0 %v203
    %225 = vmatprep.subr.bf16.mxu0 0
    %226 = vmatpush1.bf16.msra.mxu0 %v204
    %227 = vmatprep.subr.bf16.mxu0 0
    %228 = vmatpush1.bf16.msra.mxu0 %v205
    %229 = vmatprep.subr.bf16.mxu0 0
    %230 = vmatpush1.bf16.msra.mxu0 %v206
    %231 = vmatprep.subr.bf16.mxu0 0
    %232 = vmatpush1.bf16.msra.mxu0 0
    %233 = vmatprep.subr.bf16.mxu0 0
    %234 = vmatpush1.bf16.msra.mxu0 0
    %235 = vmatprep.subr.bf16.mxu0 0
    %236 = vmatpush1.bf16.msra.mxu0 0
    %237 = vmatprep.subr.bf16.mxu0 0
    %238 = vmatpush1.bf16.msra.mxu0 0
    %239 = vmatprep.subr.bf16.mxu0 0
    %240 = vmatpush1.bf16.msra.mxu0 0
    %241 = vmatprep.subr.bf16.mxu0 0
    %242 = vmatpush1.bf16.msra.mxu0 0
    %243 = vmatprep.subr.bf16.mxu0 0
    %244 = vmatpush1.bf16.msra.mxu0 0
    %245 = vmatprep.subr.bf16.mxu0 0
    %246 = vmatpush1.bf16.msra.mxu0 0
    %247 = vmatprep.mubr.bf16.mxu0 0
    %248 = vmatmul.mubr.bf16.gmra.mrb[0].mxu0 %v140
    %v249 = vpop.f32.mrb[0].mxu0
    %v250 = vadd.f32 %v165, %v249
    %v251 = vpop.f32.mrb[0].mxu0
    %v252 = vpop.f32.mrb[0].mxu0
    %v253 = vadd.f32 %v165, %v252
    %v254 = vpop.f32.mrb[0].mxu0
    %255 = vmatprep.mubr.bf16.mxu0 0
    %256 = vmatmul.mubr.bf16.gmra.mrb[0].mxu0 %v141
    %v257 = vpop.f32.mrb[0].mxu0
    %v258 = vadd.f32 %v165, %v257
    %v259 = vpop.f32.mrb[0].mxu0
    %v260 = vpop.f32.mrb[0].mxu0
    %v261 = vadd.f32 %v165, %v260
    %v262 = vpop.f32.mrb[0].mxu0
    %263 = vmatprep.mubr.bf16.mxu0 0
    %264 = vmatmul.mubr.bf16.gmra.mrb[0].mxu0 %v142
    %v265 = vpop.f32.mrb[0].mxu0
    %v266 = vadd.f32 %v165, %v265
    %v267 = vpop.f32.mrb[0].mxu0
    %v268 = vpop.f32.mrb[0].mxu0
    %v269 = vadd.f32 %v165, %v268
    %v270 = vpop.f32.mrb[0].mxu0
    %271 = vmatprep.mubr.bf16.mxu0 0
    %272 = vmatmul.mubr.bf16.gmra.mrb[0].mxu0 %v143
    %v273 = vpop.f32.mrb[0].mxu0
    %v274 = vadd.f32 %v165, %v273
    %v275 = vpop.f32.mrb[0].mxu0
    %v276 = vpop.f32.mrb[0].mxu0
    %v277 = vpop.f32.mrb[0].mxu0
    %278 = vdwg.mxu0
    %279 = vst [vmem:[#allocation2] sm:$0xff] %v250
    %280 = vst [vmem:[#allocation2 + $0x8] sm:$0xff] %v253
    %281 = vst [vmem:[#allocation2 + $0x10] sm:$0xff] %v258
    %282 = vst [vmem:[#allocation2 + $0x18] sm:$0xff] %v261
    %283 = vst [vmem:[#allocation2 + $0x20] sm:$0xff] %v266
    %284 = vst [vmem:[#allocation2 + $0x28] sm:$0xff] %v269
    %285 = vst [vmem:[#allocation2 + $0x30] sm:$0xff] %v274
    // Predicated region
    $region22: #{tpu_custom_call.1} parent=1 // pred_check
      _
    $region23: #{tpu_custom_call.1} parent=1 // pred_check_branch
      %287 = sbr.rel (0) target = $region25
    $region24: #{tpu_custom_call.1} parent=1 // pred_region
      %s289 = ssub.s32 896, 896
      %290 = vsyncadd [#allocation3], %s289
      %s291 = sshll.u32 [#allocation2], 4
      %s292 = int_to_ptr.vmem [resolvable:$true] %s291
      %297 = dma.vmem_to_hbm [thread:$0]  %s292, 896, %s5, [#allocation3], 128, 128, 8
    $region25: #{tpu_custom_call.1} parent=1 // pred_fallthru
      _
    // Predicated region
    $region26: #{tpu_custom_call.1} parent=1 // pred_check
      _
    $region27: #{tpu_custom_call.1} parent=1 // pred_check_branch
      %299 = sbr.rel (0) target = $region29
    $region28: #{tpu_custom_call.1} parent=1 // pred_region
      %300 = dma.done [#allocation3], 896
    $region29: #{tpu_custom_call.1} parent=1 // pred_fallthru
      _
    %301 = vsyncpa [#allocation3], 1

</llo_original>
